<compile_context>
chip_gen: v7x
topology: tpu7x:2x2x1
jax: 0.10.0
libtpu: 0.0.40
codegen_flags: <defaults>
</compile_context>

<pallas_src>
import jax
import jax.numpy as jnp
from jax.experimental import pallas as pl
from jax.experimental.pallas import tpu as pltpu

LEAKY_SLOPE = 0.01   # nn.LeakyReLU default
BN_EPS = 1e-5        # nn.BatchNorm1d default


def _leaky_relu(x):
    return jnp.where(x > 0, x, LEAKY_SLOPE * x)


def _fold_bn(w, b, gamma, beta, mean, var):
    """Fold eval-mode BatchNorm into a preceding Linear (Linear -> BN order)."""
    scale = gamma * jax.lax.rsqrt(var + BN_EPS)     # (1, C_out)
    w_f = w * scale                                 # scale per output column
    b_f = b * scale + (beta - mean * scale)
    return w_f, b_f


def build_time_masked_adjacency(edge_index, edge_time, node_time, edge_weight, num_nodes):
    """Dense (T, N, N): A[t, dst, src] = w_e if edge_time_e <= node_time_t (reference only)."""
    T = node_time.shape[0]
    mask = (edge_time[None, :] <= node_time[:, None]).astype(jnp.float32)   # (T, E)
    w = edge_weight[None, :].astype(jnp.float32) * mask                      # (T, E)
    src, dst = edge_index[0], edge_index[1]
    A = jnp.zeros((T, num_nodes, num_nodes), jnp.float32)
    A = A.at[:, dst, src].add(w)
    return A


def build_block_diag_adjacency_T(edge_index, edge_time, node_time, edge_weight,
                                 num_nodes, dtype=jnp.float32):
    """Transposed, block-diagonal time-masked adjacency for the fused kernel.

    Returns At_bd of shape (T*N, T*N) with
        At_bd[t*N + s, t*N + d] = sum_e w_e * [edge_time_e <= node_time_t][src_e==s][dst_e==d]
    i.e. the transpose of each per-time adjacency placed block-diagonally, so both
    DGN propagations become single flat matmuls (act_T @ At_bd).
    Built with one-hot matmuls (MXU-friendly) instead of a scatter-add; if the
    temporal graph is static across calls, build this once and reuse it.
    """
    T = node_time.shape[0]
    N = num_nodes
    hp = jax.lax.Precision.HIGHEST
    src, dst = edge_index[0], edge_index[1]
    S = jax.nn.one_hot(src, N, dtype=jnp.float32)            # (E, N)
    D = jax.nn.one_hot(dst, N, dtype=jnp.float32)            # (E, N)
    mask_w = jnp.where(edge_time[None, :] <= node_time[:, None],
                       edge_weight[None, :].astype(jnp.float32), 0.0)   # (T, E)
    Sw = mask_w[:, :, None] * S[None, :, :]                  # (T, E, N)
    At = jnp.einsum('tes,ed->tsd', Sw, D, precision=hp)      # (T, N, N) == A[t].T
    eye_t = jnp.eye(T, dtype=jnp.float32)
    At_bd = (At[:, :, None, :] * eye_t[:, None, :, None]).reshape(T * N, T * N)
    return At_bd.astype(dtype)


def _dgnn_kernel(at_ref,                      # (TN, TN)  block-diagonal A^T
                 p1_ref, b1_ref,              # (Cin, TN) hoisted x@W1', (Cin, 1) b1'
                 w12_ref, b12_ref,            # (H, Cin), (H, 1)   fc1-Linear fused into DGN2 proj
                 b2_ref,                      # (H, 1)             DGN2 bias (BN2 folded)
                 wf2a_ref, bf2a_ref,          # (Cout, H), (Cout, 1)
                 wf2b_ref, bf2b_ref,          # (Cout, Cout), (Cout, 1)
                 o_ref):                      # (Cout, TN)  lane-dense output
    at = at_ref[...]
    p1 = p1_ref[...]

    # DGN1 + folded BN1:  h^T = p1^T @ A^T + p1^T + b1'   -> (Cin, TN)
    h = jnp.dot(p1, at, preferred_element_type=jnp.float32) + p1 + b1_ref[...]
    h = _leaky_relu(h)

    # fc1 Linear fused with DGN2 channel projection:  q^T = W12^T @ h^T + b12^T
    q = jnp.dot(w12_ref[...], h, preferred_element_type=jnp.float32) + b12_ref[...]

    # DGN2 + folded BN2:  g^T = q^T @ A^T + q^T + b2'      -> (H, TN)
    g = jnp.dot(q.astype(at.dtype), at, preferred_element_type=jnp.float32) + q + b2_ref[...]

    # fc2: LeakyReLU -> Linear -> LeakyReLU -> Linear (Dropout identity in eval).
    g = _leaky_relu(g)
    g = jnp.dot(wf2a_ref[...], g, preferred_element_type=jnp.float32) + bf2a_ref[...]
    g = _leaky_relu(g)
    g = jnp.dot(wf2b_ref[...], g, preferred_element_type=jnp.float32) + bf2b_ref[...]
    # TODO(synk): training-mode Dropout and BatchNorm batch statistics are not modeled.

    o_ref[...] = g                            # (Cout, TN): one full 128-lane store


@jax.jit
def dgnn_forward(x, edge_index, edge_time, node_time, edge_weight, weights):
    N, Cin = x.shape
    T = node_time.shape[0]
    TN = T * N
    H = weights["wf1"].shape[1]
    Cout = weights["wf2a"].shape[1]
    hp = jax.lax.Precision.HIGHEST

    # f32 adjacency at small sizes (accuracy); bf16 once its HBM footprint dominates.
    a_dtype = jnp.float32 if TN <= 512 else jnp.bfloat16
    # TODO(synk): for TN >~ 2048 the flat (TN, TN) form outgrows VMEM; tile the
    # adjacency over destination rows ((Tb, Nb, N) blocks), raise vmem_limit_bytes,
    # and split the T*N lane dim in two for v7x's second TensorCore.
    At_bd = build_block_diag_adjacency_T(
        edge_index, edge_time, node_time, edge_weight, N, a_dtype)

    # Fold eval-mode BatchNorm into the preceding DGN linear layers.
    w1f, b1f = _fold_bn(weights["w1"], weights["b1"],
                        weights["bn1_g"], weights["bn1_b"],
                        weights["bn1_m"], weights["bn1_v"])
    w2f, b2f = _fold_bn(weights["w2"], weights["b2"],
                        weights["bn2_g"], weights["bn2_b"],
                        weights["bn2_m"], weights["bn2_v"])

    # Fuse fc1's Linear into DGN2's channel projection (no nonlinearity between them
    # once DGN2 is rewritten as A@(h@W2') + h@W2' + b2').
    w12 = jnp.dot(weights["wf1"], w2f, precision=hp)          # (Cin, H)
    b12 = jnp.dot(weights["bf1"], w2f, precision=hp)          # (1, H)

    # Hoist the time-invariant part of DGN1 and lay everything out channels-first:
    # activations are (C, T*N) so the lane dim is T*N (lane-dense everywhere).
    p1 = jnp.dot(x, w1f, precision=hp)                        # (N, Cin)
    p1T = jnp.tile(p1.T, (1, T)).astype(a_dtype)              # (Cin, T*N)

    operands = (
        At_bd,                                                # (TN, TN)
        p1T, b1f.T,                                           # (Cin, TN), (Cin, 1)
        w12.T, b12.T,                                         # (H, Cin), (H, 1)
        b2f.T,                                                # (H, 1)
        weights["wf2a"].T, weights["bf2a"].T,                 # (Cout, H), (Cout, 1)
        weights["wf2b"].T, weights["bf2b"].T,                 # (Cout, Cout), (Cout, 1)
    )

    # Single grid step: the whole problem is one TensorCore's worth of work, so a
    # multi-step grid would only add pipeline overhead on single-TC v5e/v6e.
    in_specs = [pl.BlockSpec(a.shape, lambda i: (0, 0)) for a in operands]

    outT = pl.pallas_call(
        _dgnn_kernel,
        out_shape=jax.ShapeDtypeStruct((Cout, TN), jnp.float32),
        grid_spec=pltpu.PrefetchScalarGridSpec(
            num_scalar_prefetch=0,
            grid=(1,),
            in_specs=in_specs,
            out_specs=pl.BlockSpec((Cout, TN), lambda i: (0, 0)),
        ),
        compiler_params=pltpu.CompilerParams(
            dimension_semantics=("arbitrary",),
        ),
    )(*operands)

    # (Cout, T*N) -> (T, N, Cout)
    return outT.T.reshape(T, N, Cout)


def dgnn_reference(x, edge_index, edge_time, node_time, edge_weight, weights):
    """Pure-JAX f32 reference (un-fused, un-folded, scatter-built adjacency)."""
    N = x.shape[0]
    A = build_time_masked_adjacency(edge_index, edge_time, node_time, edge_weight, N)
    hp = jax.lax.Precision.HIGHEST

    def bn(h, g, b, m, v):
        return g * (h - m) * jax.lax.rsqrt(v + BN_EPS) + b

    # DGN1 -> fc1
    h = jnp.einsum('tij,jc->tic', A, x, precision=hp) + x
    h = jnp.einsum('tnc,cd->tnd', h, weights["w1"], precision=hp) + weights["b1"]
    h = bn(h, weights["bn1_g"], weights["bn1_b"], weights["bn1_m"], weights["bn1_v"])
    h = _leaky_relu(h)
    h = jnp.einsum('tnc,cd->tnd', h, weights["wf1"], precision=hp) + weights["bf1"]
    # DGN2 -> fc2
    h = jnp.einsum('tij,tjc->tic', A, h, precision=hp) + h
    h = jnp.einsum('tnc,cd->tnd', h, weights["w2"], precision=hp) + weights["b2"]
    h = bn(h, weights["bn2_g"], weights["bn2_b"], weights["bn2_m"], weights["bn2_v"])
    h = _leaky_relu(h)
    h = jnp.einsum('tnc,cd->tnd', h, weights["wf2a"], precision=hp) + weights["bf2a"]
    h = _leaky_relu(h)
    h = jnp.einsum('tnc,cd->tnd', h, weights["wf2b"], precision=hp) + weights["bf2b"]
    return h


def init_weights(key, in_channels, hidden, out_channels):
    ks = jax.random.split(key, 12)
    s = 0.1

    def rnd(k, shape):
        return (s * jax.random.normal(k, shape)).astype(jnp.float32)

    return {
        # DGN1
        "w1": rnd(ks[0], (in_channels, in_channels)),
        "b1": rnd(ks[1], (1, in_channels)),
        # fc1: BatchNorm1d(in_channels) + LeakyReLU + Linear(in_channels, hidden)
        "bn1_g": 1.0 + rnd(ks[2], (1, in_channels)),
        "bn1_b": rnd(ks[3], (1, in_channels)),
        "bn1_m": jnp.zeros((1, in_channels), jnp.float32),
        "bn1_v": jnp.ones((1, in_channels), jnp.float32),
        "wf1": rnd(ks[4], (in_channels, hidden)),
        "bf1": rnd(ks[5], (1, hidden)),
        # DGN2
        "w2": rnd(ks[6], (hidden, hidden)),
        "b2": rnd(ks[7], (1, hidden)),
        # fc2: BatchNorm1d(hidden) + LeakyReLU + Linear(hidden, out) + LeakyReLU + Linear(out, out)
        "bn2_g": 1.0 + rnd(ks[8], (1, hidden)),
        "bn2_b": rnd(ks[9], (1, hidden)),
        "bn2_m": jnp.zeros((1, hidden), jnp.float32),
        "bn2_v": jnp.ones((1, hidden), jnp.float32),
        "wf2a": rnd(ks[10], (hidden, out_channels)),
        "bf2a": jnp.zeros((1, out_channels), jnp.float32),
        "wf2b": rnd(ks[11], (out_channels, out_channels)),
        "bf2b": jnp.zeros((1, out_channels), jnp.float32),
    }


if __name__ == "__main__":
    # Small, deterministic synthetic problem (T*N = 128 exactly fills the lane dim).
    N = 16            # number of graph nodes
    IN_CH = 4         # in_channels
    HIDDEN = 32       # params['dgnn_hidden_dim']
    OUT_CH = 8        # out_channels
    T = 8             # number of node-time snapshots
    E = 48            # number of temporal edges

    key = jax.random.PRNGKey(0)
    k_x, k_src, k_dst, k_et, k_ew, k_w = jax.random.split(key, 6)

    x = jax.random.normal(k_x, (N, IN_CH), dtype=jnp.float32)
    src = jax.random.randint(k_src, (E,), 0, N, dtype=jnp.int32)
    dst = jax.random.randint(k_dst, (E,), 0, N, dtype=jnp.int32)
    edge_index = jnp.stack([src, dst], axis=0)                       # (2, E)
    edge_time = jax.random.uniform(k_et, (E,), dtype=jnp.float32)    # (E,)
    node_time = jnp.linspace(0.0, 1.0, T, dtype=jnp.float32)         # (T,)
    edge_weight = jax.random.uniform(k_ew, (E,), dtype=jnp.float32)  # (E,)

    weights = init_weights(k_w, IN_CH, HIDDEN, OUT_CH)

    out = dgnn_forward(x, edge_index, edge_time, node_time, edge_weight, weights)
    out = jax.block_until_ready(out)

    assert out.shape == (T, N, OUT_CH), out.shape
    assert bool(jnp.all(jnp.isfinite(out)))

    ref = dgnn_reference(x, edge_index, edge_time, node_time, edge_weight, weights)
    err = float(jnp.max(jnp.abs(out - ref)))
    assert err < 5e-3, f"max abs error vs reference: {err}"

    print("KERNEL_OK")
</pallas_src>

<mosaic_0001>
module attributes {stable_mosaic.version = 11 : i64} {
  func.func @_dgnn_kernel(%arg0: i32, %arg1: memref<128x128xf32, #tpu.memory_space<vmem>>, %arg2: memref<4x128xf32, #tpu.memory_space<vmem>>, %arg3: memref<4x1xf32, #tpu.memory_space<vmem>>, %arg4: memref<32x4xf32, #tpu.memory_space<vmem>>, %arg5: memref<32x1xf32, #tpu.memory_space<vmem>>, %arg6: memref<32x1xf32, #tpu.memory_space<vmem>>, %arg7: memref<8x32xf32, #tpu.memory_space<vmem>>, %arg8: memref<8x1xf32, #tpu.memory_space<vmem>>, %arg9: memref<8x8xf32, #tpu.memory_space<vmem>>, %arg10: memref<8x1xf32, #tpu.memory_space<vmem>>, %arg11: memref<8x128xf32, #tpu.memory_space<vmem>>) attributes {dimension_semantics = [#tpu.dimension_semantics<arbitrary>], iteration_bounds = array<i64: 1>, scalar_prefetch = 0 : i64, scratch_operands = 0 : i64, tpu.core_type = #tpu.core_type<tc>, window_params = [{pipeline_mode = #tpu.pipeline_mode<synchronous>, transform_indices = @transform_0, window_bounds = array<i64: 128, 128>}, {pipeline_mode = #tpu.pipeline_mode<synchronous>, transform_indices = @transform_1, window_bounds = array<i64: 4, 128>}, {pipeline_mode = #tpu.pipeline_mode<synchronous>, transform_indices = @transform_2, window_bounds = array<i64: 4, 1>}, {pipeline_mode = #tpu.pipeline_mode<synchronous>, transform_indices = @transform_3, window_bounds = array<i64: 32, 4>}, {pipeline_mode = #tpu.pipeline_mode<synchronous>, transform_indices = @transform_4, window_bounds = array<i64: 32, 1>}, {pipeline_mode = #tpu.pipeline_mode<synchronous>, transform_indices = @transform_5, window_bounds = array<i64: 32, 1>}, {pipeline_mode = #tpu.pipeline_mode<synchronous>, transform_indices = @transform_6, window_bounds = array<i64: 8, 32>}, {pipeline_mode = #tpu.pipeline_mode<synchronous>, transform_indices = @transform_7, window_bounds = array<i64: 8, 1>}, {pipeline_mode = #tpu.pipeline_mode<synchronous>, transform_indices = @transform_8, window_bounds = array<i64: 8, 8>}, {pipeline_mode = #tpu.pipeline_mode<synchronous>, transform_indices = @transform_9, window_bounds = array<i64: 8, 1>}, {pipeline_mode = #tpu.pipeline_mode<synchronous>, transform_indices = @transform_10, window_bounds = array<i64: 8, 128>}]} {
    %c0 = arith.constant 0 : index
    %c0_0 = arith.constant 0 : index
    %0 = vector.load %arg1[%c0, %c0_0] : memref<128x128xf32, #tpu.memory_space<vmem>>, vector<128x128xf32>
    %c0_1 = arith.constant 0 : index
    %c0_2 = arith.constant 0 : index
    %1 = vector.load %arg2[%c0_1, %c0_2] : memref<4x128xf32, #tpu.memory_space<vmem>>, vector<4x128xf32>
    %cst = arith.constant dense<0.000000e+00> : vector<4x128xf32>
    %2 = tpu.matmul %1, %0, %cst {dimension_numbers = #tpu.dot_dimension_numbers<[1], [0], [0], [1], [0, 0, 1, 1], [], []>} : vector<4x128xf32>, vector<128x128xf32>, vector<4x128xf32> -> vector<4x128xf32>
    %3 = arith.addf %2, %1 : vector<4x128xf32>
    %c0_3 = arith.constant 0 : index
    %c0_4 = arith.constant 0 : index
    %4 = vector.load %arg3[%c0_3, %c0_4] : memref<4x1xf32, #tpu.memory_space<vmem>>, vector<4x1xf32>
    %5 = vector.broadcast %4 : vector<4x1xf32> to vector<4x128xf32>
    %6 = arith.addf %3, %5 : vector<4x128xf32>
    %cst_5 = arith.constant 0.000000e+00 : f32
    %7 = vector.broadcast %cst_5 : f32 to vector<4x128xf32>
    %8 = arith.cmpf ogt, %6, %7 : vector<4x128xf32>
    %cst_6 = arith.constant 0.00999999977 : f32
    %9 = vector.broadcast %cst_6 : f32 to vector<4x128xf32>
    %10 = arith.mulf %9, %6 : vector<4x128xf32>
    %11 = arith.select %8, %6, %10 : vector<4x128xi1>, vector<4x128xf32>
    %c0_7 = arith.constant 0 : index
    %c0_8 = arith.constant 0 : index
    %12 = vector.load %arg4[%c0_7, %c0_8] : memref<32x4xf32, #tpu.memory_space<vmem>>, vector<32x4xf32>
    %cst_9 = arith.constant dense<0.000000e+00> : vector<32x128xf32>
    %13 = tpu.matmul %12, %11, %cst_9 {dimension_numbers = #tpu.dot_dimension_numbers<[1], [0], [0], [1], [0, 0, 1, 1], [], []>} : vector<32x4xf32>, vector<4x128xf32>, vector<32x128xf32> -> vector<32x128xf32>
    %c0_10 = arith.constant 0 : index
    %c0_11 = arith.constant 0 : index
    %14 = vector.load %arg5[%c0_10, %c0_11] : memref<32x1xf32, #tpu.memory_space<vmem>>, vector<32x1xf32>
    %15 = vector.broadcast %14 : vector<32x1xf32> to vector<32x128xf32>
    %16 = arith.addf %13, %15 : vector<32x128xf32>
    %cst_12 = arith.constant dense<0.000000e+00> : vector<32x128xf32>
    %17 = tpu.matmul %16, %0, %cst_12 {dimension_numbers = #tpu.dot_dimension_numbers<[1], [0], [0], [1], [0, 0, 1, 1], [], []>} : vector<32x128xf32>, vector<128x128xf32>, vector<32x128xf32> -> vector<32x128xf32>
    %18 = arith.addf %17, %16 : vector<32x128xf32>
    %c0_13 = arith.constant 0 : index
    %c0_14 = arith.constant 0 : index
    %19 = vector.load %arg6[%c0_13, %c0_14] : memref<32x1xf32, #tpu.memory_space<vmem>>, vector<32x1xf32>
    %20 = vector.broadcast %19 : vector<32x1xf32> to vector<32x128xf32>
    %21 = arith.addf %18, %20 : vector<32x128xf32>
    %cst_15 = arith.constant 0.000000e+00 : f32
    %22 = vector.broadcast %cst_15 : f32 to vector<32x128xf32>
    %23 = arith.cmpf ogt, %21, %22 : vector<32x128xf32>
    %cst_16 = arith.constant 0.00999999977 : f32
    %24 = vector.broadcast %cst_16 : f32 to vector<32x128xf32>
    %25 = arith.mulf %24, %21 : vector<32x128xf32>
    %26 = arith.select %23, %21, %25 : vector<32x128xi1>, vector<32x128xf32>
    %c0_17 = arith.constant 0 : index
    %c0_18 = arith.constant 0 : index
    %27 = vector.load %arg7[%c0_17, %c0_18] : memref<8x32xf32, #tpu.memory_space<vmem>>, vector<8x32xf32>
    %cst_19 = arith.constant dense<0.000000e+00> : vector<8x128xf32>
    %28 = tpu.matmul %27, %26, %cst_19 {dimension_numbers = #tpu.dot_dimension_numbers<[1], [0], [0], [1], [0, 0, 1, 1], [], []>} : vector<8x32xf32>, vector<32x128xf32>, vector<8x128xf32> -> vector<8x128xf32>
    %c0_20 = arith.constant 0 : index
    %c0_21 = arith.constant 0 : index
    %29 = vector.load %arg8[%c0_20, %c0_21] : memref<8x1xf32, #tpu.memory_space<vmem>>, vector<8x1xf32>
    %30 = vector.broadcast %29 : vector<8x1xf32> to vector<8x128xf32>
    %31 = arith.addf %28, %30 : vector<8x128xf32>
    %cst_22 = arith.constant 0.000000e+00 : f32
    %32 = vector.broadcast %cst_22 : f32 to vector<8x128xf32>
    %33 = arith.cmpf ogt, %31, %32 : vector<8x128xf32>
    %cst_23 = arith.constant 0.00999999977 : f32
    %34 = vector.broadcast %cst_23 : f32 to vector<8x128xf32>
    %35 = arith.mulf %34, %31 : vector<8x128xf32>
    %36 = arith.select %33, %31, %35 : vector<8x128xi1>, vector<8x128xf32>
    %c0_24 = arith.constant 0 : index
    %c0_25 = arith.constant 0 : index
    %37 = vector.load %arg9[%c0_24, %c0_25] : memref<8x8xf32, #tpu.memory_space<vmem>>, vector<8x8xf32>
    %cst_26 = arith.constant dense<0.000000e+00> : vector<8x128xf32>
    %38 = tpu.matmul %37, %36, %cst_26 {dimension_numbers = #tpu.dot_dimension_numbers<[1], [0], [0], [1], [0, 0, 1, 1], [], []>} : vector<8x8xf32>, vector<8x128xf32>, vector<8x128xf32> -> vector<8x128xf32>
    %c0_27 = arith.constant 0 : index
    %c0_28 = arith.constant 0 : index
    %39 = vector.load %arg10[%c0_27, %c0_28] : memref<8x1xf32, #tpu.memory_space<vmem>>, vector<8x1xf32>
    %40 = vector.broadcast %39 : vector<8x1xf32> to vector<8x128xf32>
    %41 = arith.addf %38, %40 : vector<8x128xf32>
    %c0_29 = arith.constant 0 : index
    %c0_30 = arith.constant 0 : index
    %42 = vector.load %arg11[%c0_29, %c0_30] : memref<8x128xf32, #tpu.memory_space<vmem>>, vector<8x128xf32>
    tpu.vector_store %arg11[%c0_29, %c0_30], %41 {strides = array<i32>} : memref<8x128xf32, #tpu.memory_space<vmem>>, vector<8x128xf32>,
    return
  }
  func.func @transform_0(%arg0: i32) -> (i32, i32) {
    %c0_i32 = arith.constant 0 : i32
    %c0_i32_0 = arith.constant 0 : i32
    %c0_i32_1 = arith.constant 0 : i32
    return %c0_i32, %c0_i32_0 : i32, i32
  }
  func.func @transform_1(%arg0: i32) -> (i32, i32) {
    %c0_i32 = arith.constant 0 : i32
    %c0_i32_0 = arith.constant 0 : i32
    %c0_i32_1 = arith.constant 0 : i32
    return %c0_i32, %c0_i32_0 : i32, i32
  }
  func.func @transform_2(%arg0: i32) -> (i32, i32) {
    %c0_i32 = arith.constant 0 : i32
    %c0_i32_0 = arith.constant 0 : i32
    %c0_i32_1 = arith.constant 0 : i32
    return %c0_i32, %c0_i32_0 : i32, i32
  }
  func.func @transform_3(%arg0: i32) -> (i32, i32) {
    %c0_i32 = arith.constant 0 : i32
    %c0_i32_0 = arith.constant 0 : i32
    %c0_i32_1 = arith.constant 0 : i32
    return %c0_i32, %c0_i32_0 : i32, i32
  }
  func.func @transform_4(%arg0: i32) -> (i32, i32) {
    %c0_i32 = arith.constant 0 : i32
    %c0_i32_0 = arith.constant 0 : i32
    %c0_i32_1 = arith.constant 0 : i32
    return %c0_i32, %c0_i32_0 : i32, i32
  }
  func.func @transform_5(%arg0: i32) -> (i32, i32) {
    %c0_i32 = arith.constant 0 : i32
    %c0_i32_0 = arith.constant 0 : i32
    %c0_i32_1 = arith.constant 0 : i32
    return %c0_i32, %c0_i32_0 : i32, i32
  }
  func.func @transform_6(%arg0: i32) -> (i32, i32) {
    %c0_i32 = arith.constant 0 : i32
    %c0_i32_0 = arith.constant 0 : i32
    %c0_i32_1 = arith.constant 0 : i32
    return %c0_i32, %c0_i32_0 : i32, i32
  }
  func.func @transform_7(%arg0: i32) -> (i32, i32) {
    %c0_i32 = arith.constant 0 : i32
    %c0_i32_0 = arith.constant 0 : i32
    %c0_i32_1 = arith.constant 0 : i32
    return %c0_i32, %c0_i32_0 : i32, i32
  }
  func.func @transform_8(%arg0: i32) -> (i32, i32) {
    %c0_i32 = arith.constant 0 : i32
    %c0_i32_0 = arith.constant 0 : i32
    %c0_i32_1 = arith.constant 0 : i32
    return %c0_i32, %c0_i32_0 : i32, i32
  }
  func.func @transform_9(%arg0: i32) -> (i32, i32) {
    %c0_i32 = arith.constant 0 : i32
    %c0_i32_0 = arith.constant 0 : i32
    %c0_i32_1 = arith.constant 0 : i32
    return %c0_i32, %c0_i32_0 : i32, i32
  }
  func.func @transform_10(%arg0: i32) -> (i32, i32) {
    %c0_i32 = arith.constant 0 : i32
    %c0_i32_0 = arith.constant 0 : i32
    %c0_i32_1 = arith.constant 0 : i32
    return %c0_i32, %c0_i32_0 : i32, i32
  }
}

</mosaic_0001>

<llo_original>
// kernel: tile.9
$region0: #{tile.9}
  %s0 = inlined_call_operand.vmem [shape: f32[4,8,16], index: 0, kind: input, shape index: {}]
  %s1 = inlined_call_operand.vmem [shape: f32[4,128], index: 1, kind: output, shape index: {}]
  $region1: #{tile.9} parent=0
    #allocation0 [shape = 'u8[4096]{0}', space=vmem, size = 0x1000, scoped, tag = 'scoped mem for output reshape']
    %v2 = vld [vmem:[%s0] ss:$8 sm:$0xf]
    %vm3 = vcmask 130048
    %4 = vst.msk [vmem:[#allocation0] sm:$0xf] %vm3, %v2
    %s5 = scalar_lea.vmem %s0, 7
    %v6 = vld [vmem:[%s5] ss:$8 sm:$0xf]
    %7 = vrot.lane.b32.xlu0 %v6, 112
    %v8 = vpop.permute.xlu0 %7
    %vm9 = vcmask 1048448
    %10 = vst.msk [vmem:[#allocation0] sm:$0xf] %vm9, %v8
    %s11 = scalar_lea.vmem %s0, 6
    %v12 = vld [vmem:[%s11] ss:$8 sm:$0xf]
    %13 = vrot.lane.b32.xlu0 %v12, 96
    %v14 = vpop.permute.xlu0 %13
    %vm15 = vcmask 917248
    %16 = vst.msk [vmem:[#allocation0] sm:$0xf] %vm15, %v14
    %s17 = scalar_lea.vmem %s0, 5
    %v18 = vld [vmem:[%s17] ss:$8 sm:$0xf]
    %19 = vrot.lane.b32.xlu0 %v18, 80
    %v20 = vpop.permute.xlu0 %19
    %vm21 = vcmask 786048
    %22 = vst.msk [vmem:[#allocation0] sm:$0xf] %vm21, %v20
    %s23 = scalar_lea.vmem %s0, 4
    %v24 = vld [vmem:[%s23] ss:$8 sm:$0xf]
    %25 = vrot.lane.b32.xlu0 %v24, 64
    %v26 = vpop.permute.xlu0 %25
    %vm27 = vcmask 654848
    %28 = vst.msk [vmem:[#allocation0] sm:$0xf] %vm27, %v26
    %s29 = scalar_lea.vmem %s0, 3
    %v30 = vld [vmem:[%s29] ss:$8 sm:$0xf]
    %31 = vrot.lane.b32.xlu0 %v30, 48
    %v32 = vpop.permute.xlu0 %31
    %vm33 = vcmask 523648
    %34 = vst.msk [vmem:[#allocation0] sm:$0xf] %vm33, %v32
    %s35 = scalar_lea.vmem %s0, 2
    %v36 = vld [vmem:[%s35] ss:$8 sm:$0xf]
    %37 = vrot.lane.b32.xlu0 %v36, 32
    %v38 = vpop.permute.xlu0 %37
    %vm39 = vcmask 392448
    %40 = vst.msk [vmem:[#allocation0] sm:$0xf] %vm39, %v38
    %s41 = scalar_lea.vmem %s0, 1
    %v42 = vld [vmem:[%s41] ss:$8 sm:$0xf]
    %43 = vrot.lane.b32.xlu0 %v42, 16
    %v44 = vpop.permute.xlu0 %43
    %vm45 = vcmask 261248
    %46 = vst.msk [vmem:[#allocation0] sm:$0xf] %vm45, %v44
    %s48 = sshllo.u32 0, 4
    %v50 = vld [vmem:[#allocation0] sm:%s48]
    %s51 = sshllo.u32 0, 4
    %52 = vst [vmem:[%s1] sm:%s51] %v50

// kernel: dgnn_forward.1
$region0: #{dgnn_forward.1}
  #allocation0 [shape = 'u32[]', space=smem, size = 0x4, offset = 0x4, fixed_abs, tag = 'smem constant byte address 0x4 - core index']
  #allocation1 [shape = 'u32[144,128]{1,0:T(1,128)}', space=vmem, size = 0x12000, scoped, tag = 'internal scratch']
  %s0 = inlined_call_operand.vmem [shape: f32[128,128], index: 0, kind: input, shape index: {}]
  %s1 = inlined_call_operand.vmem [shape: f32[4,128], index: 1, kind: input, shape index: {}]
  %s2 = inlined_call_operand.vmem [shape: f32[4,1], index: 2, kind: input, shape index: {}]
  %s3 = inlined_call_operand.vmem [shape: f32[32,4], index: 3, kind: input, shape index: {}]
  %s4 = inlined_call_operand.vmem [shape: f32[32,1], index: 4, kind: input, shape index: {}]
  %s5 = inlined_call_operand.vmem [shape: f32[32,1], index: 5, kind: input, shape index: {}]
  %s6 = inlined_call_operand.vmem [shape: f32[8,32], index: 6, kind: input, shape index: {}]
  %s7 = inlined_call_operand.vmem [shape: f32[8,1], index: 7, kind: input, shape index: {}]
  %s8 = inlined_call_operand.vmem [shape: f32[8,8], index: 8, kind: input, shape index: {}]
  %s9 = inlined_call_operand.vmem [shape: f32[8,1], index: 9, kind: input, shape index: {}]
  %s10 = inlined_call_operand.vmem [shape: f32[8,128], index: 10, kind: output, shape index: {}]
  %s11 = sld [smem:[#allocation0]]
  $region50: #{dgnn_forward.1} parent=0
    _
  %s13 = ssub.s32 1, %s11
  %s14 = scalar_select 0, %s13, %s11
  // Predicated region
  $region2: #{dgnn_forward.1} parent=0 // pred_check
    _
  $region3: #{dgnn_forward.1} parent=0 // pred_check_branch
    %16 = sbr.rel (0) target = $region5
  $region4: #{dgnn_forward.1} parent=0 // pred_region
    _
  $region5: #{dgnn_forward.1} parent=0 // pred_fallthru
    _
  // Predicated region
  $region6: #{dgnn_forward.1} parent=0 // pred_check
    _
  $region7: #{dgnn_forward.1} parent=0 // pred_check_branch
    %18 = sbr.rel (0) target = $region9
  $region8: #{dgnn_forward.1} parent=0 // pred_region
    _
  $region9: #{dgnn_forward.1} parent=0 // pred_fallthru
    _
  // Predicated region
  $region10: #{dgnn_forward.1} parent=0 // pred_check
    _
  $region11: #{dgnn_forward.1} parent=0 // pred_check_branch
    %20 = sbr.rel (0) target = $region13
  $region12: #{dgnn_forward.1} parent=0 // pred_region
    _
  $region13: #{dgnn_forward.1} parent=0 // pred_fallthru
    _
  // Predicated region
  $region14: #{dgnn_forward.1} parent=0 // pred_check
    _
  $region15: #{dgnn_forward.1} parent=0 // pred_check_branch
    %22 = sbr.rel (0) target = $region17
  $region16: #{dgnn_forward.1} parent=0 // pred_region
    _
  $region17: #{dgnn_forward.1} parent=0 // pred_fallthru
    _
  // Predicated region
  $region18: #{dgnn_forward.1} parent=0 // pred_check
    _
  $region19: #{dgnn_forward.1} parent=0 // pred_check_branch
    %24 = sbr.rel (0) target = $region21
  $region20: #{dgnn_forward.1} parent=0 // pred_region
    _
  $region21: #{dgnn_forward.1} parent=0 // pred_fallthru
    _
  // Predicated region
  $region22: #{dgnn_forward.1} parent=0 // pred_check
    _
  $region23: #{dgnn_forward.1} parent=0 // pred_check_branch
    %26 = sbr.rel (0) target = $region25
  $region24: #{dgnn_forward.1} parent=0 // pred_region
    _
  $region25: #{dgnn_forward.1} parent=0 // pred_fallthru
    _
  // Predicated region
  $region26: #{dgnn_forward.1} parent=0 // pred_check
    _
  $region27: #{dgnn_forward.1} parent=0 // pred_check_branch
    %28 = sbr.rel (0) target = $region29
  $region28: #{dgnn_forward.1} parent=0 // pred_region
    _
  $region29: #{dgnn_forward.1} parent=0 // pred_fallthru
    _
  // Predicated region
  $region30: #{dgnn_forward.1} parent=0 // pred_check
    _
  $region31: #{dgnn_forward.1} parent=0 // pred_check_branch
    %30 = sbr.rel (0) target = $region33
  $region32: #{dgnn_forward.1} parent=0 // pred_region
    _
  $region33: #{dgnn_forward.1} parent=0 // pred_fallthru
    _
  // Predicated region
  $region34: #{dgnn_forward.1} parent=0 // pred_check
    _
  $region35: #{dgnn_forward.1} parent=0 // pred_check_branch
    %32 = sbr.rel (0) target = $region37
  $region36: #{dgnn_forward.1} parent=0 // pred_region
    _
  $region37: #{dgnn_forward.1} parent=0 // pred_fallthru
    _
  // Predicated region
  $region38: #{dgnn_forward.1} parent=0 // pred_check
    _
  $region39: #{dgnn_forward.1} parent=0 // pred_check_branch
    %34 = sbr.rel (0) target = $region41
  $region40: #{dgnn_forward.1} parent=0 // pred_region
    _
  $region41: #{dgnn_forward.1} parent=0 // pred_fallthru
    _
  %v35 = vld [vmem:[%s0] sm:$0xff]
  %v36 = vld [vmem:[%s0 + $0x8] sm:$0xff]
  %v37 = vld [vmem:[%s0 + $0x10] sm:$0xff]
  %v38 = vld [vmem:[%s0 + $0x18] sm:$0xff]
  %v39 = vld [vmem:[%s0 + $0x20] sm:$0xff]
  %v40 = vld [vmem:[%s0 + $0x28] sm:$0xff]
  %v41 = vld [vmem:[%s0 + $0x30] sm:$0xff]
  %v42 = vld [vmem:[%s0 + $0x38] sm:$0xff]
  %v43 = vld [vmem:[%s0 + $0x40] sm:$0xff]
  %v44 = vld [vmem:[%s0 + $0x48] sm:$0xff]
  %v45 = vld [vmem:[%s0 + $0x50] sm:$0xff]
  %v46 = vld [vmem:[%s0 + $0x58] sm:$0xff]
  %v47 = vld [vmem:[%s0 + $0x60] sm:$0xff]
  %v48 = vld [vmem:[%s0 + $0x68] sm:$0xff]
  %v49 = vld [vmem:[%s0 + $0x70] sm:$0xff]
  %v50 = vld [vmem:[%s0 + $0x78] sm:$0xff]
  %v51 = vld [vmem:[%s1] sm:$0xf]
  %52 = vmatprep.subr.mxu0 0.0
  %53 = vmatpush1.msra.mxu0 %v35
  %54 = vmatprep.subr.mxu0 0.0
  %55 = vmatpush1.msra.mxu0 %v36
  %56 = vmatprep.subr.mxu0 0.0
  %57 = vmatpush1.msra.mxu0 %v37
  %58 = vmatprep.subr.mxu0 0.0
  %59 = vmatpush1.msra.mxu0 %v38
  %60 = vmatprep.subr.mxu0 0.0
  %61 = vmatpush1.msra.mxu0 %v39
  %62 = vmatprep.subr.mxu0 0.0
  %63 = vmatpush1.msra.mxu0 %v40
  %64 = vmatprep.subr.mxu0 0.0
  %65 = vmatpush1.msra.mxu0 %v41
  %66 = vmatprep.subr.mxu0 0.0
  %67 = vmatpush1.msra.mxu0 %v42
  %68 = vmatprep.subr.mxu0 0.0
  %69 = vmatpush1.msra.mxu0 %v43
  %70 = vmatprep.subr.mxu0 0.0
  %71 = vmatpush1.msra.mxu0 %v44
  %72 = vmatprep.subr.mxu0 0.0
  %73 = vmatpush1.msra.mxu0 %v45
  %74 = vmatprep.subr.mxu0 0.0
  %75 = vmatpush1.msra.mxu0 %v46
  %76 = vmatprep.subr.mxu0 0.0
  %77 = vmatpush1.msra.mxu0 %v47
  %78 = vmatprep.subr.mxu0 0.0
  %79 = vmatpush1.msra.mxu0 %v48
  %80 = vmatprep.subr.mxu0 0.0
  %81 = vmatpush1.msra.mxu0 %v49
  %82 = vmatprep.subr.mxu0 0.0
  %83 = vmatpush1.msra.mxu0 %v50
  %84 = vmatprep.subr.mxu0 0.0
  %85 = vmatpush1.msra.mxu0 0.0
  %86 = vmatprep.subr.mxu0 0.0
  %87 = vmatpush1.msra.mxu0 0.0
  %88 = vmatprep.subr.mxu0 0.0
  %89 = vmatpush1.msra.mxu0 0.0
  %90 = vmatprep.subr.mxu0 0.0
  %91 = vmatpush1.msra.mxu0 0.0
  %92 = vmatprep.subr.mxu0 0.0
  %93 = vmatpush1.msra.mxu0 0.0
  %94 = vmatprep.subr.mxu0 0.0
  %95 = vmatpush1.msra.mxu0 0.0
  %96 = vmatprep.subr.mxu0 0.0
  %97 = vmatpush1.msra.mxu0 0.0
  %98 = vmatprep.subr.mxu0 0.0
  %99 = vmatpush1.msra.mxu0 0.0
  %100 = vmatprep.subr.mxu0 0.0
  %101 = vmatpush1.msra.mxu0 0.0
  %102 = vmatprep.subr.mxu0 0.0
  %103 = vmatpush1.msra.mxu0 0.0
  %104 = vmatprep.subr.mxu0 0.0
  %105 = vmatpush1.msra.mxu0 0.0
  %106 = vmatprep.subr.mxu0 0.0
  %107 = vmatpush1.msra.mxu0 0.0
  %108 = vmatprep.subr.mxu0 0.0
  %109 = vmatpush1.msra.mxu0 0.0
  %110 = vmatprep.subr.mxu0 0.0
  %111 = vmatpush1.msra.mxu0 0.0
  %112 = vmatprep.subr.mxu0 0.0
  %113 = vmatpush1.msra.mxu0 0.0
  %114 = vmatprep.subr.mxu0 0.0
  %115 = vmatpush1.msra.mxu0 0.0
  %116 = vmatprep.mubr.f32.mxu0 0.0
  %117 = vmatmul.mubr.f32.gmra.mrb[0].mxu0 %v51
  %v118 = vpop.f32.mrb[0].mxu0
  %v119 = vadd.f32 %v51, %v118
  %v120 = vpop.f32.mrb[0].mxu0
  %121 = vdwg.mxu0
  %v122 = vld [vmem:[%s2] sm:$0xf]
  %124 = vset.pattern.permute.xlu0 0
  %125 = vperm.xlu0 %124, %v122
  %v126 = vpop.permute.xlu0 %125
  %v128 = vadd.f32 %v119, %v126
  %vm129 = vcmp.gt.f32.partialorder %v128, 0.0
  %v130 = vmul.f32 %v128, 0.01
  %v131 = vsel %vm129, %v128, %v130
  %v132 = vld [vmem:[%s3] sm:$0xff]
  %v133 = vld [vmem:[%s3 + $0x8] sm:$0xff]
  %v134 = vld [vmem:[%s3 + $0x10] sm:$0xff]
  %v135 = vld [vmem:[%s3 + $0x18] sm:$0xff]
  %v136 = vld [vmem:[%s4] sm:$0xff]
  %v137 = vld [vmem:[%s4 + $0x8] sm:$0xff]
  %v138 = vld [vmem:[%s4 + $0x10] sm:$0xff]
  %v139 = vld [vmem:[%s4 + $0x18] sm:$0xff]
  %141 = vset.pattern.permute.xlu0 0
  %142 = vperm.xlu0 %141, %v136
  %v143 = vpop.permute.xlu0 %142
  %146 = vset.pattern.permute.xlu0 0
  %147 = vperm.xlu0 %146, %v137
  %v148 = vpop.permute.xlu0 %147
  %151 = vset.pattern.permute.xlu0 0
  %152 = vperm.xlu0 %151, %v138
  %v153 = vpop.permute.xlu0 %152
  %156 = vset.pattern.permute.xlu0 0
  %157 = vperm.xlu0 %156, %v139
  %v158 = vpop.permute.xlu0 %157
  %vm160 = vcmask 31744
  %v162 = vsel %vm160, %v132, 0
  %v165 = vsel %vm160, %v133, 0
  %v168 = vsel %vm160, %v134, 0
  %v171 = vsel %vm160, %v135, 0
  %vm173 = vcmask 1043456
  %v175 = vsel %vm173, %v131, 0
  %177 = vmatprep.subr.mxu0 0.0
  %178 = vmatpush1.msra.mxu0 %v175
  %179 = vmatprep.subr.mxu0 0.0
  %180 = vmatpush1.msra.mxu0 0.0
  %181 = vmatprep.subr.mxu0 0.0
  %182 = vmatpush1.msra.mxu0 0.0
  %183 = vmatprep.subr.mxu0 0.0
  %184 = vmatpush1.msra.mxu0 0.0
  %185 = vmatprep.subr.mxu0 0.0
  %186 = vmatpush1.msra.mxu0 0.0
  %187 = vmatprep.subr.mxu0 0.0
  %188 = vmatpush1.msra.mxu0 0.0
  %189 = vmatprep.subr.mxu0 0.0
  %190 = vmatpush1.msra.mxu0 0.0
  %191 = vmatprep.subr.mxu0 0.0
  %192 = vmatpush1.msra.mxu0 0.0
  %193 = vmatprep.subr.mxu0 0.0
  %194 = vmatpush1.msra.mxu0 0.0
  %195 = vmatprep.subr.mxu0 0.0
  %196 = vmatpush1.msra.mxu0 0.0
  %197 = vmatprep.subr.mxu0 0.0
  %198 = vmatpush1.msra.mxu0 0.0
  %199 = vmatprep.subr.mxu0 0.0
  %200 = vmatpush1.msra.mxu0 0.0
  %201 = vmatprep.subr.mxu0 0.0
  %202 = vmatpush1.msra.mxu0 0.0
  %203 = vmatprep.subr.mxu0 0.0
  %204 = vmatpush1.msra.mxu0 0.0
  %205 = vmatprep.subr.mxu0 0.0
  %206 = vmatpush1.msra.mxu0 0.0
  %207 = vmatprep.subr.mxu0 0.0
  %208 = vmatpush1.msra.mxu0 0.0
  %209 = vmatprep.subr.mxu0 0.0
  %210 = vmatpush1.msra.mxu0 0.0
  %211 = vmatprep.subr.mxu0 0.0
  %212 = vmatpush1.msra.mxu0 0.0
  %213 = vmatprep.subr.mxu0 0.0
  %214 = vmatpush1.msra.mxu0 0.0
  %215 = vmatprep.subr.mxu0 0.0
  %216 = vmatpush1.msra.mxu0 0.0
  %217 = vmatprep.subr.mxu0 0.0
  %218 = vmatpush1.msra.mxu0 0.0
  %219 = vmatprep.subr.mxu0 0.0
  %220 = vmatpush1.msra.mxu0 0.0
  %221 = vmatprep.subr.mxu0 0.0
  %222 = vmatpush1.msra.mxu0 0.0
  %223 = vmatprep.subr.mxu0 0.0
  %224 = vmatpush1.msra.mxu0 0.0
  %225 = vmatprep.subr.mxu0 0.0
  %226 = vmatpush1.msra.mxu0 0.0
  %227 = vmatprep.subr.mxu0 0.0
  %228 = vmatpush1.msra.mxu0 0.0
  %229 = vmatprep.subr.mxu0 0.0
  %230 = vmatpush1.msra.mxu0 0.0
  %231 = vmatprep.subr.mxu0 0.0
  %232 = vmatpush1.msra.mxu0 0.0
  %233 = vmatprep.subr.mxu0 0.0
  %234 = vmatpush1.msra.mxu0 0.0
  %235 = vmatprep.subr.mxu0 0.0
  %236 = vmatpush1.msra.mxu0 0.0
  %237 = vmatprep.subr.mxu0 0.0
  %238 = vmatpush1.msra.mxu0 0.0
  %239 = vmatprep.subr.mxu0 0.0
  %240 = vmatpush1.msra.mxu0 0.0
  %241 = vmatprep.mubr.f32.mxu0 0.0
  %242 = vmatmul.mubr.f32.gmra.mrb[0].mxu0 %v162
  %v243 = vpop.f32.mrb[0].mxu0
  %v244 = vadd.f32 %v143, %v243
  %v245 = vpop.f32.mrb[0].mxu0
  %246 = vmatprep.mubr.f32.mxu0 0.0
  %247 = vmatmul.mubr.f32.gmra.mrb[0].mxu0 %v165
  %v248 = vpop.f32.mrb[0].mxu0
  %v249 = vadd.f32 %v148, %v248
  %v250 = vpop.f32.mrb[0].mxu0
  %251 = vmatprep.mubr.f32.mxu0 0.0
  %252 = vmatmul.mubr.f32.gmra.mrb[0].mxu0 %v168
  %v253 = vpop.f32.mrb[0].mxu0
  %v254 = vadd.f32 %v153, %v253
  %v255 = vpop.f32.mrb[0].mxu0
  %256 = vmatprep.mubr.f32.mxu0 0.0
  %257 = vmatmul.mubr.f32.gmra.mrb[0].mxu0 %v171
  %v258 = vpop.f32.mrb[0].mxu0
  %v259 = vadd.f32 %v158, %v258
  %v260 = vpop.f32.mrb[0].mxu0
  %261 = vdwg.mxu0
  %262 = vmatprep.subr.mxu0 0.0
  %263 = vmatpush1.msra.mxu0 %v35
  %264 = vmatprep.subr.mxu0 0.0
  %265 = vmatpush1.msra.mxu0 %v36
  %266 = vmatprep.subr.mxu0 0.0
  %267 = vmatpush1.msra.mxu0 %v37
  %268 = vmatprep.subr.mxu0 0.0
  %269 = vmatpush1.msra.mxu0 %v38
  %270 = vmatprep.subr.mxu0 0.0
  %271 = vmatpush1.msra.mxu0 %v39
  %272 = vmatprep.subr.mxu0 0.0
  %273 = vmatpush1.msra.mxu0 %v40
  %274 = vmatprep.subr.mxu0 0.0
  %275 = vmatpush1.msra.mxu0 %v41
  %276 = vmatprep.subr.mxu0 0.0
  %277 = vmatpush1.msra.mxu0 %v42
  %278 = vmatprep.subr.mxu0 0.0
  %279 = vmatpush1.msra.mxu0 %v43
  %280 = vmatprep.subr.mxu0 0.0
  %281 = vmatpush1.msra.mxu0 %v44
  %282 = vmatprep.subr.mxu0 0.0
  %283 = vmatpush1.msra.mxu0 %v45
  %284 = vmatprep.subr.mxu0 0.0
  %285 = vmatpush1.msra.mxu0 %v46
  %286 = vmatprep.subr.mxu0 0.0
  %287 = vmatpush1.msra.mxu0 %v47
  %288 = vmatprep.subr.mxu0 0.0
  %289 = vmatpush1.msra.mxu0 %v48
  %290 = vmatprep.subr.mxu0 0.0
  %291 = vmatpush1.msra.mxu0 %v49
  %292 = vmatprep.subr.mxu0 0.0
  %293 = vmatpush1.msra.mxu0 %v50
  %294 = vmatprep.subr.mxu0 0.0
  %295 = vmatpush1.msra.mxu0 0.0
  %296 = vmatprep.subr.mxu0 0.0
  %297 = vmatpush1.msra.mxu0 0.0
  %298 = vmatprep.subr.mxu0 0.0
  %299 = vmatpush1.msra.mxu0 0.0
  %300 = vmatprep.subr.mxu0 0.0
  %301 = vmatpush1.msra.mxu0 0.0
  %302 = vmatprep.subr.mxu0 0.0
  %303 = vmatpush1.msra.mxu0 0.0
  %304 = vmatprep.subr.mxu0 0.0
  %305 = vmatpush1.msra.mxu0 0.0
  %306 = vmatprep.subr.mxu0 0.0
  %307 = vmatpush1.msra.mxu0 0.0
  %308 = vmatprep.subr.mxu0 0.0
  %309 = vmatpush1.msra.mxu0 0.0
  %310 = vmatprep.subr.mxu0 0.0
  %311 = vmatpush1.msra.mxu0 0.0
  %312 = vmatprep.subr.mxu0 0.0
  %313 = vmatpush1.msra.mxu0 0.0
  %314 = vmatprep.subr.mxu0 0.0
  %315 = vmatpush1.msra.mxu0 0.0
  %316 = vmatprep.subr.mxu0 0.0
  %317 = vmatpush1.msra.mxu0 0.0
  %318 = vmatprep.subr.mxu0 0.0
  %319 = vmatpush1.msra.mxu0 0.0
  %320 = vmatprep.subr.mxu0 0.0
  %321 = vmatpush1.msra.mxu0 0.0
  %322 = vmatprep.subr.mxu0 0.0
  %323 = vmatpush1.msra.mxu0 0.0
  %324 = vmatprep.subr.mxu0 0.0
  %325 = vmatpush1.msra.mxu0 0.0
  %326 = vmatprep.mubr.f32.mxu0 0.0
  %327 = vmatmul.mubr.f32.gmra.mrb[0].mxu0 %v244
  %v328 = vpop.f32.mrb[0].mxu0
  %v329 = vadd.f32 %v244, %v328
  %v330 = vpop.f32.mrb[0].mxu0
  %331 = vmatprep.mubr.f32.mxu0 0.0
  %332 = vmatmul.mubr.f32.gmra.mrb[0].mxu0 %v249
  %v333 = vpop.f32.mrb[0].mxu0
  %v334 = vadd.f32 %v249, %v333
  %v335 = vpop.f32.mrb[0].mxu0
  %336 = vmatprep.mubr.f32.mxu0 0.0
  %337 = vmatmul.mubr.f32.gmra.mrb[0].mxu0 %v254
  %v338 = vpop.f32.mrb[0].mxu0
  %v339 = vadd.f32 %v254, %v338
  %v340 = vpop.f32.mrb[0].mxu0
  %341 = vmatprep.mubr.f32.mxu0 0.0
  %342 = vmatmul.mubr.f32.gmra.mrb[0].mxu0 %v259
  %v343 = vpop.f32.mrb[0].mxu0
  %v344 = vadd.f32 %v259, %v343
  %v345 = vpop.f32.mrb[0].mxu0
  %346 = vdwg.mxu0
  %v347 = vld [vmem:[%s5] sm:$0xff]
  %v348 = vld [vmem:[%s5 + $0x8] sm:$0xff]
  %v349 = vld [vmem:[%s5 + $0x10] sm:$0xff]
  %v350 = vld [vmem:[%s5 + $0x18] sm:$0xff]
  %352 = vset.pattern.permute.xlu0 0
  %353 = vperm.xlu0 %352, %v347
  %v354 = vpop.permute.xlu0 %353
  %357 = vset.pattern.permute.xlu0 0
  %358 = vperm.xlu0 %357, %v348
  %v359 = vpop.permute.xlu0 %358
  %362 = vset.pattern.permute.xlu0 0
  %363 = vperm.xlu0 %362, %v349
  %v364 = vpop.permute.xlu0 %363
  %367 = vset.pattern.permute.xlu0 0
  %368 = vperm.xlu0 %367, %v350
  %v369 = vpop.permute.xlu0 %368
  %v371 = vadd.f32 %v329, %v354
  %v372 = vadd.f32 %v334, %v359
  %v373 = vadd.f32 %v339, %v364
  %v374 = vadd.f32 %v344, %v369
  %vm375 = vcmp.gt.f32.partialorder %v371, 0.0
  %vm376 = vcmp.gt.f32.partialorder %v372, 0.0
  %vm377 = vcmp.gt.f32.partialorder %v373, 0.0
  %vm378 = vcmp.gt.f32.partialorder %v374, 0.0
  %v379 = vmul.f32 %v371, 0.01
  %v380 = vmul.f32 %v372, 0.01
  %v381 = vmul.f32 %v373, 0.01
  %v382 = vmul.f32 %v374, 0.01
  %v383 = vsel %vm375, %v371, %v379
  %v384 = vsel %vm376, %v372, %v380
  %v385 = vsel %vm377, %v373, %v381
  %v386 = vsel %vm378, %v374, %v382
  %v387 = vld [vmem:[%s6] sm:$0xff]
  %v388 = vld [vmem:[%s7] sm:$0xff]
  %390 = vset.pattern.permute.xlu0 0
  %391 = vperm.xlu0 %390, %v388
  %v392 = vpop.permute.xlu0 %391
  %vm394 = vcmask 261120
  %v396 = vsel %vm394, %v387, 0
  %398 = vmatprep.subr.mxu0 0.0
  %399 = vmatpush1.msra.mxu0 %v383
  %400 = vmatprep.subr.mxu0 0.0
  %401 = vmatpush1.msra.mxu0 %v384
  %402 = vmatprep.subr.mxu0 0.0
  %403 = vmatpush1.msra.mxu0 %v385
  %404 = vmatprep.subr.mxu0 0.0
  %405 = vmatpush1.msra.mxu0 %v386
  %406 = vmatprep.subr.mxu0 0.0
  %407 = vmatpush1.msra.mxu0 0.0
  %408 = vmatprep.subr.mxu0 0.0
  %409 = vmatpush1.msra.mxu0 0.0
  %410 = vmatprep.subr.mxu0 0.0
  %411 = vmatpush1.msra.mxu0 0.0
  %412 = vmatprep.subr.mxu0 0.0
  %413 = vmatpush1.msra.mxu0 0.0
  %414 = vmatprep.subr.mxu0 0.0
  %415 = vmatpush1.msra.mxu0 0.0
  %416 = vmatprep.subr.mxu0 0.0
  %417 = vmatpush1.msra.mxu0 0.0
  %418 = vmatprep.subr.mxu0 0.0
  %419 = vmatpush1.msra.mxu0 0.0
  %420 = vmatprep.subr.mxu0 0.0
  %421 = vmatpush1.msra.mxu0 0.0
  %422 = vmatprep.subr.mxu0 0.0
  %423 = vmatpush1.msra.mxu0 0.0
  %424 = vmatprep.subr.mxu0 0.0
  %425 = vmatpush1.msra.mxu0 0.0
  %426 = vmatprep.subr.mxu0 0.0
  %427 = vmatpush1.msra.mxu0 0.0
  %428 = vmatprep.subr.mxu0 0.0
  %429 = vmatpush1.msra.mxu0 0.0
  %430 = vmatprep.subr.mxu0 0.0
  %431 = vmatpush1.msra.mxu0 0.0
  %432 = vmatprep.subr.mxu0 0.0
  %433 = vmatpush1.msra.mxu0 0.0
  %434 = vmatprep.subr.mxu0 0.0
  %435 = vmatpush1.msra.mxu0 0.0
  %436 = vmatprep.subr.mxu0 0.0
  %437 = vmatpush1.msra.mxu0 0.0
  %438 = vmatprep.subr.mxu0 0.0
  %439 = vmatpush1.msra.mxu0 0.0
  %440 = vmatprep.subr.mxu0 0.0
  %441 = vmatpush1.msra.mxu0 0.0
  %442 = vmatprep.subr.mxu0 0.0
  %443 = vmatpush1.msra.mxu0 0.0
  %444 = vmatprep.subr.mxu0 0.0
  %445 = vmatpush1.msra.mxu0 0.0
  %446 = vmatprep.subr.mxu0 0.0
  %447 = vmatpush1.msra.mxu0 0.0
  %448 = vmatprep.subr.mxu0 0.0
  %449 = vmatpush1.msra.mxu0 0.0
  %450 = vmatprep.subr.mxu0 0.0
  %451 = vmatpush1.msra.mxu0 0.0
  %452 = vmatprep.subr.mxu0 0.0
  %453 = vmatpush1.msra.mxu0 0.0
  %454 = vmatprep.subr.mxu0 0.0
  %455 = vmatpush1.msra.mxu0 0.0
  %456 = vmatprep.subr.mxu0 0.0
  %457 = vmatpush1.msra.mxu0 0.0
  %458 = vmatprep.subr.mxu0 0.0
  %459 = vmatpush1.msra.mxu0 0.0
  %460 = vmatprep.subr.mxu0 0.0
  %461 = vmatpush1.msra.mxu0 0.0
  %462 = vmatprep.mubr.f32.mxu0 0.0
  %463 = vmatmul.mubr.f32.gmra.mrb[0].mxu0 %v396
  %v464 = vpop.f32.mrb[0].mxu0
  %v465 = vadd.f32 %v392, %v464
  %v466 = vpop.f32.mrb[0].mxu0
  %467 = vdwg.mxu0
  %vm468 = vcmp.gt.f32.partialorder %v465, 0.0
  %v469 = vmul.f32 %v465, 0.01
  %v470 = vsel %vm468, %v465, %v469
  %v471 = vld [vmem:[%s8] sm:$0xff]
  %v472 = vld [vmem:[%s9] sm:$0xff]
  %474 = vset.pattern.permute.xlu0 0
  %475 = vperm.xlu0 %474, %v472
  %v476 = vpop.permute.xlu0 %475
  %vm478 = vcmask 64512
  %v480 = vsel %vm478, %v471, 0
  %482 = vmatprep.subr.mxu0 0.0
  %483 = vmatpush1.msra.mxu0 %v470
  %484 = vmatprep.subr.mxu0 0.0
  %485 = vmatpush1.msra.mxu0 0.0
  %486 = vmatprep.subr.mxu0 0.0
  %487 = vmatpush1.msra.mxu0 0.0
  %488 = vmatprep.subr.mxu0 0.0
  %489 = vmatpush1.msra.mxu0 0.0
  %490 = vmatprep.subr.mxu0 0.0
  %491 = vmatpush1.msra.mxu0 0.0
  %492 = vmatprep.subr.mxu0 0.0
  %493 = vmatpush1.msra.mxu0 0.0
  %494 = vmatprep.subr.mxu0 0.0
  %495 = vmatpush1.msra.mxu0 0.0
  %496 = vmatprep.subr.mxu0 0.0
  %497 = vmatpush1.msra.mxu0 0.0
  %498 = vmatprep.subr.mxu0 0.0
  %499 = vmatpush1.msra.mxu0 0.0
  %500 = vmatprep.subr.mxu0 0.0
  %501 = vmatpush1.msra.mxu0 0.0
  %502 = vmatprep.subr.mxu0 0.0
  %503 = vmatpush1.msra.mxu0 0.0
  %504 = vmatprep.subr.mxu0 0.0
  %505 = vmatpush1.msra.mxu0 0.0
  %506 = vmatprep.subr.mxu0 0.0
  %507 = vmatpush1.msra.mxu0 0.0
  %508 = vmatprep.subr.mxu0 0.0
  %509 = vmatpush1.msra.mxu0 0.0
  %510 = vmatprep.subr.mxu0 0.0
  %511 = vmatpush1.msra.mxu0 0.0
  %512 = vmatprep.subr.mxu0 0.0
  %513 = vmatpush1.msra.mxu0 0.0
  %514 = vmatprep.subr.mxu0 0.0
  %515 = vmatpush1.msra.mxu0 0.0
  %516 = vmatprep.subr.mxu0 0.0
  %517 = vmatpush1.msra.mxu0 0.0
  %518 = vmatprep.subr.mxu0 0.0
  %519 = vmatpush1.msra.mxu0 0.0
  %520 = vmatprep.subr.mxu0 0.0
  %521 = vmatpush1.msra.mxu0 0.0
  %522 = vmatprep.subr.mxu0 0.0
  %523 = vmatpush1.msra.mxu0 0.0
  %524 = vmatprep.subr.mxu0 0.0
  %525 = vmatpush1.msra.mxu0 0.0
  %526 = vmatprep.subr.mxu0 0.0
  %527 = vmatpush1.msra.mxu0 0.0
  %528 = vmatprep.subr.mxu0 0.0
  %529 = vmatpush1.msra.mxu0 0.0
  %530 = vmatprep.subr.mxu0 0.0
  %531 = vmatpush1.msra.mxu0 0.0
  %532 = vmatprep.subr.mxu0 0.0
  %533 = vmatpush1.msra.mxu0 0.0
  %534 = vmatprep.subr.mxu0 0.0
  %535 = vmatpush1.msra.mxu0 0.0
  %536 = vmatprep.subr.mxu0 0.0
  %537 = vmatpush1.msra.mxu0 0.0
  %538 = vmatprep.subr.mxu0 0.0
  %539 = vmatpush1.msra.mxu0 0.0
  %540 = vmatprep.subr.mxu0 0.0
  %541 = vmatpush1.msra.mxu0 0.0
  %542 = vmatprep.subr.mxu0 0.0
  %543 = vmatpush1.msra.mxu0 0.0
  %544 = vmatprep.subr.mxu0 0.0
  %545 = vmatpush1.msra.mxu0 0.0
  %546 = vmatprep.mubr.f32.mxu0 0.0
  %547 = vmatmul.mubr.f32.gmra.mrb[0].mxu0 %v480
  %v548 = vpop.f32.mrb[0].mxu0
  %v549 = vadd.f32 %v476, %v548
  %v550 = vpop.f32.mrb[0].mxu0
  %551 = vdwg.mxu0
  %552 = vst [vmem:[%s10] sm:$0xff] %v549
  // Predicated region
  $region42: #{dgnn_forward.1} parent=0 // pred_check
    _
  $region43: #{dgnn_forward.1} parent=0 // pred_check_branch
    %554 = sbr.rel (0) target = $region45
  $region44: #{dgnn_forward.1} parent=0 // pred_region
    _
  $region45: #{dgnn_forward.1} parent=0 // pred_fallthru
    _
  // Predicated region
  $region46: #{dgnn_forward.1} parent=0 // pred_check
    _
  $region47: #{dgnn_forward.1} parent=0 // pred_check_branch
    %556 = sbr.rel (0) target = $region49
  $region48: #{dgnn_forward.1} parent=0 // pred_region
    _
  $region49: #{dgnn_forward.1} parent=0 // pred_fallthru
    _

</llo_original>
